<compile_context>
chip_gen: v6e
topology: v6e:2x2x1
jax: 0.10.0
libtpu: 0.0.40
codegen_flags: <defaults>
</compile_context>

<pallas_src>
import numpy as np
import jax
import jax.numpy as jnp
from jax.experimental import pallas as pl
from jax.experimental.pallas import tpu as pltpu

# ---------------- SMPL-X structural dimensions (small but structurally faithful) -----
V = 256                       # mesh vertices (real SMPL-X: 10475 -> padded to V_PAD)
J = 55                        # kinematic joints
NUM_BETAS = 10
NUM_EXPR = 10
NSHAPE = NUM_BETAS + NUM_EXPR           # 20 shape+expression dirs
NSA = NSHAPE + 1                        # + ones column (template row), kernel A
P = (J - 1) * 9                         # 486 pose-feature dim
KDIM = NSHAPE + P                       # 506 fused blendshape K dim
KDIM_P = 512                            # padded K; row KDIM holds the template ("ones" row)
JPAD = 128                              # rest-joint output padded lane-dense
JSKIN = 64                              # J padded for the skinning matmul K dim
TV = min(512, ((V + 127) // 128) * 128) # vertex lane tile (512 at real SMPL-X size)
V_PAD = ((V + TV - 1) // TV) * TV       # vertex axis padded to a multiple of TV
NVT = V_PAD // TV


def _round_up(x, m):
    return ((x + m - 1) // m) * m


def _pad_rows(x, n_total, pad_row=None):
    pad = n_total - x.shape[0]
    if pad <= 0:
        return x
    if pad_row is None:
        fill = jnp.zeros((pad,) + x.shape[1:], x.dtype)
    else:
        fill = jnp.broadcast_to(pad_row, (pad,) + x.shape[1:])
    return jnp.concatenate([x, fill], axis=0)


# =====================================================================================
# Pallas kernels
# =====================================================================================
def _jrest_kernel(betas_ref, sd_ref, jregT_ref, jrest_ref):
    """Rest-joint regression, V-tiled reduction with a resident accumulator.

    betas : [Bp, NSA]      bf16   (betas|expression|1)  — batch in the matmul M dimension
    sd    : [3, NSA, TV]   bf16   per-coordinate (shapedirs|template row) tile
    jregT : [TV, JPAD]     bf16   J_regressor^T tile (padded joints/vertices are zero)
    jrest : [3, Bp, JPAD]  f32    resident accumulator (same output block for every step)
    """
    @pl.when(pl.program_id(0) == 0)
    def _():
        jrest_ref[...] = jnp.zeros_like(jrest_ref)

    betas = betas_ref[...]
    jreg = jregT_ref[...]
    for c in range(3):
        vsh = jnp.dot(betas, sd_ref[c], preferred_element_type=jnp.float32)     # [Bp, TV]
        jrest_ref[c] += jnp.dot(vsh.astype(jnp.bfloat16), jreg,
                                preferred_element_type=jnp.float32)             # [Bp, JPAD]


def _lbs_kernel(bpf_ref, sdpd_ref, a_ref, wt_ref, scal_ref, v3d_ref, v2d_ref):
    """Per (V-tile, batch-tile): fused shape+pose+template blendshapes, LBS skinning,
    pelvis-centering + global rotation + translation, perspective projection.

    bpf  : [BT, KDIM_P]      bf16   betas|pose_feats|1|0  (matmul M = batch tile)
    sdpd : [KDIM_P, 3*TV]    bf16   shapedirs|posedirs|template; 3 coords concat along lanes
    a    : [12*BT, JSKIN]    bf16   12 useful transform rows (r=c*4+k major, batch minor)
    wt   : [JSKIN, TV]       bf16   lbs_weights^T tile (padded rows/cols zero)
    scal : [BT, 24]          f32    per-sample scalars: R(9) | K(9) | pelvis(3) | transl_up(3)
    out v3d : [3, BT, TV] f32
    out v2d : [2, BT, TV] f32
    """
    BT = bpf_ref.shape[0]
    TVt = v3d_ref.shape[-1]

    # one fused blendshape dot (template included via the "ones" K row); lane-sliced per coord
    vp_all = jnp.dot(bpf_ref[...], sdpd_ref[...],
                     preferred_element_type=jnp.float32)                         # [BT, 3*TV]
    vp = [vp_all[:, c * TVt:(c + 1) * TVt] for c in range(3)]

    # blended skinning transforms: 12 rows for the whole batch tile, one bf16 matmul
    t = jnp.dot(a_ref[...], wt_ref[...], preferred_element_type=jnp.float32)     # [12*BT, TV]

    scal = scal_ref[...]                                                         # [BT, 24]

    def sc(i):                                                                   # scalar lanes
        return scal[:, i:i + 1]                                                  # [BT, 1]

    # LBS accumulation on full [BT, TV] vregs (rows of t are vreg-aligned batch groups)
    verts = []
    for c in range(3):
        acc = t[(c * 4 + 3) * BT:(c * 4 + 4) * BT, :]                            # translation
        for k in range(3):
            acc = acc + t[(c * 4 + k) * BT:(c * 4 + k + 1) * BT, :] * vp[k]
        verts.append(acc)                                                        # [BT, TV]

    # pelvis-centering + global rotation + translation (VPU broadcast-FMAs, no tiny-K MXU)
    cx = verts[0] - sc(18)
    cy = verts[1] - sc(19)
    cz = verts[2] - sc(20)
    vcam = [sc(3 * c + 0) * cx + sc(3 * c + 1) * cy + sc(3 * c + 2) * cz + sc(21 + c)
            for c in range(3)]

    # perspective projection (EUP approx reciprocal shared by u and v)
    inv_z = pl.reciprocal(vcam[2], approx=True)
    xn = vcam[0] * inv_z
    yn = vcam[1] * inv_z
    u = sc(9) * xn + sc(10) * yn + sc(11)
    v = sc(12) * xn + sc(13) * yn + sc(14)

    v3d_ref[0] = vcam[0]
    v3d_ref[1] = vcam[1]
    v3d_ref[2] = vcam[2]
    v2d_ref[0] = u
    v2d_ref[1] = v


# =====================================================================================
# Plain-JAX glue (small, sequential)
# =====================================================================================
def rotvec_to_rotmat(rv):
    """Rodrigues. rv: [..., 3] -> [..., 3, 3]."""
    angle = jnp.linalg.norm(rv, axis=-1, keepdims=True)
    safe = jnp.where(angle < 1e-8, 1.0, angle)
    axis = rv / safe
    x, y, z = axis[..., 0], axis[..., 1], axis[..., 2]
    s = jnp.sin(angle)[..., 0]
    c = jnp.cos(angle)[..., 0]
    C = 1.0 - c
    r0 = jnp.stack([c + x * x * C, x * y * C - z * s, x * z * C + y * s], -1)
    r1 = jnp.stack([y * x * C + z * s, c + y * y * C, y * z * C - x * s], -1)
    r2 = jnp.stack([z * x * C - y * s, z * y * C + x * s, c + z * z * C], -1)
    return jnp.stack([r0, r1, r2], -2)


def rigid_transform(rot_mats, j_rest, parents):
    """Forward kinematics (smplx.lbs.batch_rigid_transform).
    rot_mats: [bs,J,3,3], j_rest: [bs,J,3] -> posed_joints [bs,J,3], A [bs,J,4,4]."""
    bs = rot_mats.shape[0]
    rel = j_rest.at[:, 1:].add(-j_rest[:, parents[1:]])
    tm = jnp.concatenate([rot_mats, rel[..., None]], axis=-1)               # [bs,J,3,4]
    bottom = jnp.broadcast_to(jnp.array([0., 0., 0., 1.], jnp.float32),
                              (bs, J, 1, 4))
    tm = jnp.concatenate([tm, bottom], axis=-2)                             # [bs,J,4,4]
    chain = [tm[:, 0]]
    for i in range(1, J):
        chain.append(jnp.matmul(chain[int(parents[i])], tm[:, i]))
    G = jnp.stack(chain, axis=1)                                            # [bs,J,4,4]
    posed_joints = G[:, :, :3, 3]
    rot_j = jnp.einsum('bjxy,bjy->bjx', G[:, :, :3, :3], j_rest)
    A = G.at[:, :, :3, 3].add(-rot_j)
    return posed_joints, A


def build_full_pose(pose):
    """[bs,53,3] -> SMPL-X full pose [bs,55,3] (global=0, leye=reye=0, flat hands)."""
    bs = pose.shape[0]
    z = jnp.zeros((bs, 1, 3), jnp.float32)
    return jnp.concatenate([z, pose[:, 1:22], pose[:, 52:53], z, z,
                            pose[:, 22:37], pose[:, 37:52]], axis=1)


# =====================================================================================
# SMPL_Layer equivalent
# =====================================================================================
class PallasSMPLXLayer:
    def __init__(self, key, num_betas=10, person_center=None):
        assert num_betas == NUM_BETAS
        self.person_center_idx = None          # person_center=None -> pelvis path
        ks = jax.random.split(key, 5)
        v_template = 0.2 * jax.random.normal(ks[0], (V, 3), jnp.float32)
        shapedirs = 0.02 * jax.random.normal(ks[1], (V, 3, NSHAPE), jnp.float32)
        posedirs = 0.002 * jax.random.normal(ks[2], (P, V, 3), jnp.float32)
        jreg = jax.random.uniform(ks[3], (J, V), jnp.float32) + 1e-3
        J_regressor = jreg / jreg.sum(axis=1, keepdims=True)
        w = jax.random.uniform(ks[4], (V, J), jnp.float32) + 1e-3
        lbs_weights = w / w.sum(axis=1, keepdims=True)
        parents = np.array([-1] + [max(0, (i - 1) // 2) for i in range(1, J)], np.int32)

        # raw (vertex-major, f32) params — used by the pure-JAX reference
        self.raw = dict(v_template=v_template, shapedirs=shapedirs, posedirs=posedirs,
                        J_regressor=J_regressor, lbs_weights=lbs_weights, parents=parents)
        self.parents = parents

        # ---- kernel A layout: (shapedirs | template) fused along K, coordinate-major, bf16
        SD3 = jnp.transpose(shapedirs, (1, 2, 0))                    # [3, NSHAPE, V]
        vt3 = v_template.T[:, None, :]                               # [3, 1, V]
        sd_a = jnp.concatenate([SD3, vt3], axis=1)                   # [3, NSA, V]
        self.SD_A = jnp.pad(sd_a, ((0, 0), (0, 0), (0, V_PAD - V))).astype(jnp.bfloat16)
        # J_regressor^T: padded vertices (rows) and padded joints (cols) are zero -> inert
        self.jregT = jnp.pad(J_regressor.T,
                             ((0, V_PAD - V), (0, JPAD - J))).astype(jnp.bfloat16)

        # ---- kernel B layout: (shapedirs | posedirs | template) fused along K; the 3
        #      coordinates are concatenated along lanes inside each V tile; bf16.
        PD3 = jnp.transpose(posedirs, (2, 0, 1))                     # [3, P, V]
        sdpd = jnp.concatenate([SD3, PD3, vt3], axis=1)              # [3, KDIM+1, V]
        sdpd = jnp.pad(sdpd, ((0, 0), (0, KDIM_P - (KDIM + 1)), (0, V_PAD - V)))
        sdpd = jnp.transpose(sdpd, (1, 0, 2)).reshape(KDIM_P, 3, NVT, TV)
        sdpd = jnp.transpose(sdpd, (0, 2, 1, 3)).reshape(KDIM_P, NVT * 3 * TV)
        self.SDPD = sdpd.astype(jnp.bfloat16)                        # [KDIM_P, NVT*3*TV]

        # lbs_weights^T padded to [JSKIN, V_PAD]; padded rows/cols zero -> inert
        self.wT = jnp.pad(lbs_weights.T,
                          ((0, JSKIN - J), (0, V_PAD - V))).astype(jnp.bfloat16)

    # ------------------------------------------------------------------ forward
    def __call__(self, pose, shape, loc, dist, transl, K, expression=None):
        assert pose.ndim == 3 and pose.shape[1:] == (53, 3)
        assert shape.ndim == 2 and shape.shape[1] == NUM_BETAS
        bs = pose.shape[0]
        if bs == 0:
            return {}
        if loc is not None and dist is not None:
            assert loc.shape == (bs, 2) and dist.shape == (bs, 1)

        if expression is None:
            expression = jnp.zeros((bs, NUM_EXPR), jnp.float32)
        betas_full = jnp.concatenate([shape, expression], axis=-1)          # [bs, 20]
        full_pose = build_full_pose(pose)                                   # [bs, 55, 3]

        # ---- batch tiling: prefer a single batch tile (nbt=1) so per-sample inputs
        # (bpf / A / scal) stay resident across all V tiles.
        BT = min(128, _round_up(bs, 8))
        nbt = pl.cdiv(bs, BT)
        BS_pad = nbt * BT

        # ---- kernel A: rest-joint regression (batch in M, V-tiled reduction) ----------
        betas_aug = jnp.concatenate([betas_full, jnp.ones((bs, 1), jnp.float32)], -1)
        betas_aug = _pad_rows(betas_aug, BS_pad).astype(jnp.bfloat16)       # [BS_pad, NSA]

        jrest_cm = pl.pallas_call(
            _jrest_kernel,
            out_shape=jax.ShapeDtypeStruct((3, BS_pad, JPAD), jnp.float32),
            grid=(NVT,),
            in_specs=[
                pl.BlockSpec((BS_pad, NSA), lambda v: (0, 0)),
                pl.BlockSpec((3, NSA, TV), lambda v: (0, 0, v)),
                pl.BlockSpec((TV, JPAD), lambda v: (v, 0)),
            ],
            out_specs=pl.BlockSpec((3, BS_pad, JPAD), lambda v: (0, 0, 0)),
            compiler_params=pltpu.CompilerParams(dimension_semantics=("arbitrary",)),
        )(betas_aug, self.SD_A, self.jregT)

        j_rest = jnp.transpose(jrest_cm[:, :bs, :J], (1, 2, 0))             # [bs, J, 3]

        # ---- small sequential glue: Rodrigues + forward kinematics --------------------
        rot_mats = rotvec_to_rotmat(full_pose)                              # [bs,55,3,3]
        pf = (rot_mats[:, 1:] - jnp.eye(3, dtype=jnp.float32)).reshape(bs, P)
        posed_joints, A = rigid_transform(rot_mats, j_rest, self.parents)   # [bs,J,3],[bs,J,4,4]

        pelvis = posed_joints[:, 0]                                         # [bs,3]
        Rg = rotvec_to_rotmat(pose[:, 0])                                   # [bs,3,3]

        if transl is None:  # inverse_perspective_projection(loc, K, dist)
            pts = jnp.concatenate([loc[:, None, :], jnp.ones((bs, 1, 1), jnp.float32)], -1)
            Kinv = jnp.linalg.inv(K)
            transl = jnp.einsum('bij,bkj->bki', Kinv, pts)[:, 0] * dist     # [bs,3]
        transl_up = transl + pelvis                                         # person_center is None

        # joint outputs stay in plain JAX (only 55 points; avoids masked 55-lane stores)
        j3d_cam = jnp.einsum('bij,bnj->bni', Rg, posed_joints - pelvis[:, None]) \
            + transl_up[:, None]                                            # [bs,J,3]
        j2d = jnp.einsum('bij,bnj->bni', K, j3d_cam / j3d_cam[..., 2:3])[..., :2]

        # ---- kernel B inputs -----------------------------------------------------------
        ones = jnp.ones((bs, 1), jnp.float32)
        zpad = jnp.zeros((bs, KDIM_P - KDIM - 1), jnp.float32)
        bpf = jnp.concatenate([betas_full, pf, ones, zpad], axis=-1)        # [bs, 512]
        bpf = _pad_rows(bpf, BS_pad).astype(jnp.bfloat16)                   # pre-cast bf16

        # only the 12 useful transform rows (r = c*4+k), row-major / batch-minor, bf16
        A_pad = _pad_rows(A.reshape(bs, J * 16), BS_pad).reshape(BS_pad, J, 4, 4)
        A12 = jnp.transpose(A_pad[:, :, :3, :].reshape(nbt, BT, J, 12),
                            (0, 3, 1, 2)).reshape(nbt * 12 * BT, J)         # [nbt*12*BT, J]
        A2d = jnp.pad(A12, ((0, 0), (0, JSKIN - J))).astype(jnp.bfloat16)   # [nbt*12*BT, 64]

        scal = jnp.concatenate([Rg.reshape(bs, 9), K.reshape(bs, 9),
                                pelvis, transl_up], axis=-1)                # [bs, 24]
        pad_row = jnp.zeros((24,), jnp.float32).at[23].set(1.0)             # z=1 for pad rows
        scal_p = _pad_rows(scal, BS_pad, pad_row)

        # ---- kernel B: fused blendshapes + skinning + rot/transl + projection ----------
        v3d_cm, v2d_cm = pl.pallas_call(
            _lbs_kernel,
            out_shape=(jax.ShapeDtypeStruct((3, BS_pad, V_PAD), jnp.float32),
                       jax.ShapeDtypeStruct((2, BS_pad, V_PAD), jnp.float32)),
            grid=(NVT, nbt),          # bt inner -> big weight tiles stay put per V tile
            in_specs=[
                pl.BlockSpec((BT, KDIM_P), lambda vt, bt: (bt, 0)),         # betas|pose feats|1
                pl.BlockSpec((KDIM_P, 3 * TV), lambda vt, bt: (0, vt)),     # fused blend dirs
                pl.BlockSpec((12 * BT, JSKIN), lambda vt, bt: (bt, 0)),     # A rows (12)
                pl.BlockSpec((JSKIN, TV), lambda vt, bt: (0, vt)),          # lbs_weights^T
                pl.BlockSpec((BT, 24), lambda vt, bt: (bt, 0)),             # R|K|pelvis|transl
            ],
            out_specs=(pl.BlockSpec((3, BT, TV), lambda vt, bt: (0, bt, vt)),
                       pl.BlockSpec((2, BT, TV), lambda vt, bt: (0, bt, vt))),
            compiler_params=pltpu.CompilerParams(
                dimension_semantics=("parallel", "parallel")),
        )(bpf, self.SDPD, A2d, self.wT, scal_p)

        # TODO(synk): downstream consumers should take these coordinate-major slabs directly;
        # at real SMPL-X size this transpose roughly doubles the kernel's HBM traffic.
        v3d = jnp.transpose(v3d_cm[:, :bs, :V], (1, 2, 0))                  # [bs, V, 3]
        v2d = jnp.transpose(v2d_cm[:, :bs, :V], (1, 2, 0))                  # [bs, V, 2]

        # TODO(synk): real smplx output.joints also appends vertex-selected landmarks
        # (127 joints total); here j3d only contains the 55 kinematic joints.
        return {'v3d': v3d, 'j3d': j3d_cam, 'j2d': j2d, 'v2d': v2d,
                'transl': transl, 'transl_pelvis': j3d_cam[:, 0:1]}

    # ------------------------------------------------------------ pure-JAX reference
    def reference(self, pose, shape, loc, dist, transl, K, expression=None):
        r = self.raw
        bs = pose.shape[0]
        if expression is None:
            expression = jnp.zeros((bs, NUM_EXPR), jnp.float32)
        betas_full = jnp.concatenate([shape, expression], axis=-1)
        v_shaped = r['v_template'][None] + jnp.einsum('vck,bk->bvc', r['shapedirs'], betas_full)
        j_rest = jnp.einsum('jv,bvc->bjc', r['J_regressor'], v_shaped)
        full_pose = build_full_pose(pose)
        rm = rotvec_to_rotmat(full_pose)
        pf = (rm[:, 1:] - jnp.eye(3, dtype=jnp.float32)).reshape(bs, P)
        v_posed = v_shaped + jnp.einsum('bp,pvc->bvc', pf, r['posedirs'])
        posed_joints, A = rigid_transform(rm, j_rest, r['parents'])
        T = jnp.einsum('vj,bjik->bvik', r['lbs_weights'], A)
        vh = jnp.concatenate([v_posed, jnp.ones((bs, V, 1), jnp.float32)], -1)
        verts = jnp.einsum('bvik,bvk->bvi', T, vh)[..., :3]
        pelvis = posed_joints[:, 0:1]
        R = rotvec_to_rotmat(pose[:, 0])
        j3d = jnp.einsum('bij,bnj->bni', R, posed_joints - pelvis)
        v3d = jnp.einsum('bij,bnj->bni', R, verts - pelvis)
        if transl is None:
            pts = jnp.concatenate([loc[:, None, :], jnp.ones((bs, 1, 1), jnp.float32)], -1)
            transl = jnp.einsum('bij,bkj->bki', jnp.linalg.inv(K), pts)[:, 0] * dist
        transl_up = transl + pelvis[:, 0]
        j3d_cam = j3d + transl_up[:, None]
        v3d_cam = v3d + transl_up[:, None]

        def proj(x):
            xn = x / x[..., 2:3]
            return jnp.einsum('bij,bnj->bni', K, xn)[..., :2]

        return {'v3d': v3d_cam, 'j3d': j3d_cam, 'j2d': proj(j3d_cam), 'v2d': proj(v3d_cam),
                'transl': transl, 'transl_pelvis': j3d_cam[:, 0:1]}


# =====================================================================================
if __name__ == "__main__":
    layer = PallasSMPLXLayer(jax.random.PRNGKey(42))

    key = jax.random.PRNGKey(0)
    k1, k2, k3, k4 = jax.random.split(key, 4)
    bs = 2
    pose = 0.3 * jax.random.normal(k1, (bs, 53, 3), jnp.float32)
    shape = 0.5 * jax.random.normal(k2, (bs, NUM_BETAS), jnp.float32)
    loc = 112.0 + 20.0 * jax.random.normal(k3, (bs, 2), jnp.float32)
    dist = 3.0 + jax.random.uniform(k4, (bs, 1), jnp.float32)
    K = jnp.tile(jnp.array([[500., 0., 112.],
                            [0., 500., 112.],
                            [0., 0., 1.]], jnp.float32)[None], (bs, 1, 1))

    out = layer(pose, shape, loc, dist, None, K)        # transl=None -> inverse projection path
    out = jax.block_until_ready(out)

    ref = layer.reference(pose, shape, loc, dist, None, K)

    def md(a, b):
        return float(jnp.max(jnp.abs(a - b)))

    assert all(jnp.all(jnp.isfinite(v)) for v in out.values())
    assert md(out['transl'], ref['transl']) < 1e-3
    assert md(out['v3d'], ref['v3d']) < 3e-2
    assert md(out['j3d'], ref['j3d']) < 3e-2
    assert md(out['transl_pelvis'], ref['transl_pelvis']) < 3e-2
    assert md(out['v2d'], ref['v2d']) < 5.0
    assert md(out['j2d'], ref['j2d']) < 5.0

    print("KERNEL_OK")
</pallas_src>

<mosaic_0001>
module attributes {stable_mosaic.version = 11 : i64} {
  func.func @_jrest_kernel(%arg0: i32, %arg1: memref<8x21xbf16, #tpu.memory_space<vmem>>, %arg2: memref<3x21x256xbf16, #tpu.memory_space<vmem>>, %arg3: memref<256x128xbf16, #tpu.memory_space<vmem>>, %arg4: memref<3x8x128xf32, #tpu.memory_space<vmem>>) attributes {dimension_semantics = [#tpu.dimension_semantics<arbitrary>], iteration_bounds = array<i64: 1>, scalar_prefetch = 0 : i64, scratch_operands = 0 : i64, tpu.core_type = #tpu.core_type<tc>, window_params = [{pipeline_mode = #tpu.pipeline_mode<synchronous>, transform_indices = @transform_0, window_bounds = array<i64: 8, 21>}, {transform_indices = @transform_1, window_bounds = array<i64: 3, 21, 256>}, {transform_indices = @transform_2, window_bounds = array<i64: 256, 128>}, {pipeline_mode = #tpu.pipeline_mode<synchronous>, transform_indices = @transform_3, window_bounds = array<i64: 3, 8, 128>}]} {
    %c0_i32 = arith.constant 0 : i32
    %0 = arith.cmpi eq, %arg0, %c0_i32 : i32
    %1 = arith.extui %0 : i1 to i32
    %c0_i32_0 = arith.constant 0 : i32
    %2 = arith.cmpi ne, %1, %c0_i32_0 : i32
    scf.if %2 {
      %cst_34 = arith.constant 0.000000e+00 : f32
      %38 = vector.broadcast %cst_34 : f32 to vector<3x8x128xf32>
      %c0_35 = arith.constant 0 : index
      %c0_36 = arith.constant 0 : index
      %c0_37 = arith.constant 0 : index
      %39 = vector.load %arg4[%c0_35, %c0_36, %c0_37] : memref<3x8x128xf32, #tpu.memory_space<vmem>>, vector<3x8x128xf32>
      tpu.vector_store %arg4[%c0_35, %c0_36, %c0_37], %38 {strides = array<i32>} : memref<3x8x128xf32, #tpu.memory_space<vmem>>, vector<3x8x128xf32>,
    } else {
    }
    %c0 = arith.constant 0 : index
    %c0_1 = arith.constant 0 : index
    %3 = vector.load %arg1[%c0, %c0_1] : memref<8x21xbf16, #tpu.memory_space<vmem>>, vector<8x21xbf16>
    %c0_2 = arith.constant 0 : index
    %c0_3 = arith.constant 0 : index
    %4 = vector.load %arg3[%c0_2, %c0_3] : memref<256x128xbf16, #tpu.memory_space<vmem>>, vector<256x128xbf16>
    %c0_4 = arith.constant 0 : index
    %c0_5 = arith.constant 0 : index
    %c0_6 = arith.constant 0 : index
    %5 = vector.load %arg2[%c0_4, %c0_5, %c0_6] : memref<3x21x256xbf16, #tpu.memory_space<vmem>>, vector<1x21x256xbf16>
    %6 = vector.shape_cast %5 : vector<1x21x256xbf16> to vector<21x256xbf16>
    %cst = arith.constant dense<0.000000e+00> : vector<8x256xf32>
    %7 = tpu.matmul %3, %6, %cst {dimension_numbers = #tpu.dot_dimension_numbers<[1], [0], [0], [1], [0, 0, 1, 1], [], []>} : vector<8x21xbf16>, vector<21x256xbf16>, vector<8x256xf32> -> vector<8x256xf32>
    %c0_7 = arith.constant 0 : index
    %c0_8 = arith.constant 0 : index
    %c0_9 = arith.constant 0 : index
    %8 = vector.load %arg4[%c0_7, %c0_8, %c0_9] : memref<3x8x128xf32, #tpu.memory_space<vmem>>, vector<1x8x128xf32>
    %9 = vector.shape_cast %8 : vector<1x8x128xf32> to vector<8x128xf32>
    %10 = arith.truncf %7 : vector<8x256xf32> to vector<8x256xbf16>
    %cst_10 = arith.constant dense<0.000000e+00> : vector<8x128xf32>
    %11 = tpu.matmul %10, %4, %cst_10 {dimension_numbers = #tpu.dot_dimension_numbers<[1], [0], [0], [1], [0, 0, 1, 1], [], []>} : vector<8x256xbf16>, vector<256x128xbf16>, vector<8x128xf32> -> vector<8x128xf32>
    %12 = arith.addf %9, %11 : vector<8x128xf32>
    %c0_11 = arith.constant 0 : index
    %c0_12 = arith.constant 0 : index
    %c0_13 = arith.constant 0 : index
    %13 = vector.load %arg4[%c0_11, %c0_12, %c0_13] : memref<3x8x128xf32, #tpu.memory_space<vmem>>, vector<1x8x128xf32>
    %14 = vector.shape_cast %13 : vector<1x8x128xf32> to vector<8x128xf32>
    %15 = vector.shape_cast %12 : vector<8x128xf32> to vector<1x8x128xf32>
    tpu.vector_store %arg4[%c0_11, %c0_12, %c0_13], %15 {strides = array<i32>} : memref<3x8x128xf32, #tpu.memory_space<vmem>>, vector<1x8x128xf32>,
    %c1 = arith.constant 1 : index
    %c0_14 = arith.constant 0 : index
    %c0_15 = arith.constant 0 : index
    %16 = vector.load %arg2[%c1, %c0_14, %c0_15] : memref<3x21x256xbf16, #tpu.memory_space<vmem>>, vector<1x21x256xbf16>
    %17 = vector.shape_cast %16 : vector<1x21x256xbf16> to vector<21x256xbf16>
    %cst_16 = arith.constant dense<0.000000e+00> : vector<8x256xf32>
    %18 = tpu.matmul %3, %17, %cst_16 {dimension_numbers = #tpu.dot_dimension_numbers<[1], [0], [0], [1], [0, 0, 1, 1], [], []>} : vector<8x21xbf16>, vector<21x256xbf16>, vector<8x256xf32> -> vector<8x256xf32>
    %c1_17 = arith.constant 1 : index
    %c0_18 = arith.constant 0 : index
    %c0_19 = arith.constant 0 : index
    %19 = vector.load %arg4[%c1_17, %c0_18, %c0_19] : memref<3x8x128xf32, #tpu.memory_space<vmem>>, vector<1x8x128xf32>
    %20 = vector.shape_cast %19 : vector<1x8x128xf32> to vector<8x128xf32>
    %21 = arith.truncf %18 : vector<8x256xf32> to vector<8x256xbf16>
    %cst_20 = arith.constant dense<0.000000e+00> : vector<8x128xf32>
    %22 = tpu.matmul %21, %4, %cst_20 {dimension_numbers = #tpu.dot_dimension_numbers<[1], [0], [0], [1], [0, 0, 1, 1], [], []>} : vector<8x256xbf16>, vector<256x128xbf16>, vector<8x128xf32> -> vector<8x128xf32>
    %23 = arith.addf %20, %22 : vector<8x128xf32>
    %c1_21 = arith.constant 1 : index
    %c0_22 = arith.constant 0 : index
    %c0_23 = arith.constant 0 : index
    %24 = vector.load %arg4[%c1_21, %c0_22, %c0_23] : memref<3x8x128xf32, #tpu.memory_space<vmem>>, vector<1x8x128xf32>
    %25 = vector.shape_cast %24 : vector<1x8x128xf32> to vector<8x128xf32>
    %26 = vector.shape_cast %23 : vector<8x128xf32> to vector<1x8x128xf32>
    tpu.vector_store %arg4[%c1_21, %c0_22, %c0_23], %26 {strides = array<i32>} : memref<3x8x128xf32, #tpu.memory_space<vmem>>, vector<1x8x128xf32>,
    %c2 = arith.constant 2 : index
    %c0_24 = arith.constant 0 : index
    %c0_25 = arith.constant 0 : index
    %27 = vector.load %arg2[%c2, %c0_24, %c0_25] : memref<3x21x256xbf16, #tpu.memory_space<vmem>>, vector<1x21x256xbf16>
    %28 = vector.shape_cast %27 : vector<1x21x256xbf16> to vector<21x256xbf16>
    %cst_26 = arith.constant dense<0.000000e+00> : vector<8x256xf32>
    %29 = tpu.matmul %3, %28, %cst_26 {dimension_numbers = #tpu.dot_dimension_numbers<[1], [0], [0], [1], [0, 0, 1, 1], [], []>} : vector<8x21xbf16>, vector<21x256xbf16>, vector<8x256xf32> -> vector<8x256xf32>
    %c2_27 = arith.constant 2 : index
    %c0_28 = arith.constant 0 : index
    %c0_29 = arith.constant 0 : index
    %30 = vector.load %arg4[%c2_27, %c0_28, %c0_29] : memref<3x8x128xf32, #tpu.memory_space<vmem>>, vector<1x8x128xf32>
    %31 = vector.shape_cast %30 : vector<1x8x128xf32> to vector<8x128xf32>
    %32 = arith.truncf %29 : vector<8x256xf32> to vector<8x256xbf16>
    %cst_30 = arith.constant dense<0.000000e+00> : vector<8x128xf32>
    %33 = tpu.matmul %32, %4, %cst_30 {dimension_numbers = #tpu.dot_dimension_numbers<[1], [0], [0], [1], [0, 0, 1, 1], [], []>} : vector<8x256xbf16>, vector<256x128xbf16>, vector<8x128xf32> -> vector<8x128xf32>
    %34 = arith.addf %31, %33 : vector<8x128xf32>
    %c2_31 = arith.constant 2 : index
    %c0_32 = arith.constant 0 : index
    %c0_33 = arith.constant 0 : index
    %35 = vector.load %arg4[%c2_31, %c0_32, %c0_33] : memref<3x8x128xf32, #tpu.memory_space<vmem>>, vector<1x8x128xf32>
    %36 = vector.shape_cast %35 : vector<1x8x128xf32> to vector<8x128xf32>
    %37 = vector.shape_cast %34 : vector<8x128xf32> to vector<1x8x128xf32>
    tpu.vector_store %arg4[%c2_31, %c0_32, %c0_33], %37 {strides = array<i32>} : memref<3x8x128xf32, #tpu.memory_space<vmem>>, vector<1x8x128xf32>,
    return
  }
  func.func @transform_0(%arg0: i32) -> (i32, i32) {
    %c0_i32 = arith.constant 0 : i32
    %c0_i32_0 = arith.constant 0 : i32
    %c0_i32_1 = arith.constant 0 : i32
    return %c0_i32, %c0_i32_0 : i32, i32
  }
  func.func @transform_1(%arg0: i32) -> (i32, i32, i32) {
    %c0_i32 = arith.constant 0 : i32
    %c0_i32_0 = arith.constant 0 : i32
    %c0_i32_1 = arith.constant 0 : i32
    return %c0_i32, %c0_i32_0, %arg0 : i32, i32, i32
  }
  func.func @transform_2(%arg0: i32) -> (i32, i32) {
    %c0_i32 = arith.constant 0 : i32
    %c0_i32_0 = arith.constant 0 : i32
    return %arg0, %c0_i32 : i32, i32
  }
  func.func @transform_3(%arg0: i32) -> (i32, i32, i32) {
    %c0_i32 = arith.constant 0 : i32
    %c0_i32_0 = arith.constant 0 : i32
    %c0_i32_1 = arith.constant 0 : i32
    %c0_i32_2 = arith.constant 0 : i32
    return %c0_i32, %c0_i32_0, %c0_i32_1 : i32, i32, i32
  }
}

</mosaic_0001>

<llo_original>
// kernel: tpu_custom_call.1
$region0: #{tpu_custom_call.1}
  #allocation0 [shape = 'u32[]', space=smem, size = 0x4, offset = 0x4, fixed_abs, tag = 'smem constant byte address 0x4 - core index']
  #allocation1 [shape = 'u32[144,128]{1,0:T(1,128)}', space=vmem, size = 0x12000, scoped, tag = 'internal scratch']
  %s0 = inlined_call_operand.hbm [shape: bf16[8,21], index: 0, kind: input, shape index: {}]
  %s1 = inlined_call_operand.hbm [shape: bf16[3,21,256], index: 1, kind: input, shape index: {}]
  %s2 = inlined_call_operand.hbm [shape: bf16[256,128], index: 2, kind: input, shape index: {}]
  %s3 = inlined_call_operand.hbm [shape: f32[3,8,128], index: 3, kind: output, shape index: {}]
  %s4 = sld [smem:[#allocation0]]
  $region38: #{tpu_custom_call.1} parent=0
    _
  %s6 = ssub.s32 1, %s4
  %s7 = scalar_select 0, %s6, %s4
  $region1: #{tpu_custom_call.1} parent=0
    #allocation2 [shape = 'u8[2048]{0}', space=vmem, size = 0x800, scoped, tag = 'input window, operand 0, single buffered']
    #allocation3 [shape = 's32[1]{0}', space=sflag, size = 0x4, scoped, tag = 'scoped memory for tpu_custom_call.1']
    #allocation4 [shape = 's32[1]{0}', space=sflag, size = 0x4, scoped, tag = 'scoped memory for tpu_custom_call.1']
    #allocation5 [shape = 'u8[36864]{0}', space=vmem, size = 0x9000, scoped, tag = 'input window, operand 1, single buffered']
    #allocation6 [shape = 's32[1]{0}', space=sflag, size = 0x4, scoped, tag = 'scoped memory for tpu_custom_call.1']
    #allocation7 [shape = 'u8[65536]{0}', space=vmem, size = 0x10000, scoped, tag = 'input window, operand 2, single buffered']
    #allocation8 [shape = 'u8[12288]{0}', space=vmem, size = 0x3000, scoped, tag = 'output window, operand 0, single buffered']
    %8 = vsyncpa [#allocation3], 0
    %9 = vsyncpa [#allocation6], 0
    %10 = vsyncpa [#allocation4], 0
    // Predicated region
    $region2: #{tpu_custom_call.1} parent=1 // pred_check
      _
    $region3: #{tpu_custom_call.1} parent=1 // pred_check_branch
      %12 = sbr.rel (0) target = $region5
    $region4: #{tpu_custom_call.1} parent=1 // pred_region
      %s14 = ssub.s32 64, 64
      %15 = vsyncadd [#allocation3], %s14
      %s17 = sshll.u32 [#allocation2], 4
      %s18 = int_to_ptr.vmem [resolvable:$true] %s17
      %20 = dma.hbm_to_vmem [thread:$0]  %s0, 64, %s18, [#allocation3]
    $region5: #{tpu_custom_call.1} parent=1 // pred_fallthru
      _
    // Predicated region
    $region6: #{tpu_custom_call.1} parent=1 // pred_check
      _
    $region7: #{tpu_custom_call.1} parent=1 // pred_check_branch
      %22 = sbr.rel (0) target = $region9
    $region8: #{tpu_custom_call.1} parent=1 // pred_region
      %s24 = ssub.s32 1152, 1152
      %25 = vsyncadd [#allocation6], %s24
      %s26 = sshll.u32 [#allocation5], 4
      %s27 = int_to_ptr.vmem [resolvable:$true] %s26
      %32 = dma.hbm_to_vmem [thread:$0]  %s1, 1152, %s27, [#allocation6], 128, 128, 8
    $region9: #{tpu_custom_call.1} parent=1 // pred_fallthru
      _
    // Predicated region
    $region10: #{tpu_custom_call.1} parent=1 // pred_check
      _
    $region11: #{tpu_custom_call.1} parent=1 // pred_check_branch
      %34 = sbr.rel (0) target = $region13
    $region12: #{tpu_custom_call.1} parent=1 // pred_region
      %s36 = ssub.s32 2048, 2048
      %37 = vsyncadd [#allocation6], %s36
      %s38 = sshll.u32 [#allocation7], 4
      %s39 = int_to_ptr.vmem [resolvable:$true] %s38
      %44 = dma.hbm_to_vmem [thread:$0]  %s2, 2048, %s39, [#allocation6], 64, 64, 4
    $region13: #{tpu_custom_call.1} parent=1 // pred_fallthru
      _
    // Predicated region
    $region14: #{tpu_custom_call.1} parent=1 // pred_check
      _
    $region15: #{tpu_custom_call.1} parent=1 // pred_check_branch
      %46 = sbr.rel (0) target = $region17
    $region16: #{tpu_custom_call.1} parent=1 // pred_region
      %47 = dma.done [#allocation3], 64
    $region17: #{tpu_custom_call.1} parent=1 // pred_fallthru
      _
    // Predicated region
    $region18: #{tpu_custom_call.1} parent=1 // pred_check
      _
    $region19: #{tpu_custom_call.1} parent=1 // pred_check_branch
      %49 = sbr.rel (0) target = $region21
    $region20: #{tpu_custom_call.1} parent=1 // pred_region
      %50 = dma.done [#allocation6], 1152
    $region21: #{tpu_custom_call.1} parent=1 // pred_fallthru
      _
    // Predicated region
    $region22: #{tpu_custom_call.1} parent=1 // pred_check
      _
    $region23: #{tpu_custom_call.1} parent=1 // pred_check_branch
      %52 = sbr.rel (0) target = $region25
    $region24: #{tpu_custom_call.1} parent=1 // pred_region
      %53 = dma.done [#allocation6], 2048
    $region25: #{tpu_custom_call.1} parent=1 // pred_fallthru
      _
    %p55 = scmp.eq.s32.totalorder 0, 0
    // Predicated region
    $region26: #{tpu_custom_call.1} parent=1 // pred_check
      %p56 = pneg %p55
    $region27: #{tpu_custom_call.1} parent=1 // pred_check_branch
      %58 = sbr.rel (%p56) target = $region29
    $region28: #{tpu_custom_call.1} parent=1 // pred_region
      %59 = vst [vmem:[#allocation8] sm:$0xff] 0.0
      %60 = vst [vmem:[#allocation8 + $0x8] sm:$0xff] 0.0
      %61 = vst [vmem:[#allocation8 + $0x10] sm:$0xff] 0.0
    $region29: #{tpu_custom_call.1} parent=1 // pred_fallthru
      _
    %v62 = vld [vmem:[#allocation2] sm:$0xf]
    %v63 = vld [vmem:[#allocation7] sm:$0xf]
    %v64 = vld [vmem:[#allocation7 + $0x4] sm:$0xf]
    %v65 = vld [vmem:[#allocation7 + $0x8] sm:$0xf]
    %v66 = vld [vmem:[#allocation7 + $0xc] sm:$0xf]
    %v67 = vld [vmem:[#allocation7 + $0x10] sm:$0xf]
    %v68 = vld [vmem:[#allocation7 + $0x14] sm:$0xf]
    %v69 = vld [vmem:[#allocation7 + $0x18] sm:$0xf]
    %v70 = vld [vmem:[#allocation7 + $0x1c] sm:$0xf]
    %v71 = vld [vmem:[#allocation7 + $0x20] sm:$0xf]
    %v72 = vld [vmem:[#allocation7 + $0x24] sm:$0xf]
    %v73 = vld [vmem:[#allocation7 + $0x28] sm:$0xf]
    %v74 = vld [vmem:[#allocation7 + $0x2c] sm:$0xf]
    %v75 = vld [vmem:[#allocation7 + $0x30] sm:$0xf]
    %v76 = vld [vmem:[#allocation7 + $0x34] sm:$0xf]
    %v77 = vld [vmem:[#allocation7 + $0x38] sm:$0xf]
    %v78 = vld [vmem:[#allocation7 + $0x3c] sm:$0xf]
    %v79 = vld [vmem:[#allocation7 + $0x40] sm:$0xf]
    %v80 = vld [vmem:[#allocation7 + $0x44] sm:$0xf]
    %v81 = vld [vmem:[#allocation7 + $0x48] sm:$0xf]
    %v82 = vld [vmem:[#allocation7 + $0x4c] sm:$0xf]
    %v83 = vld [vmem:[#allocation7 + $0x50] sm:$0xf]
    %v84 = vld [vmem:[#allocation7 + $0x54] sm:$0xf]
    %v85 = vld [vmem:[#allocation7 + $0x58] sm:$0xf]
    %v86 = vld [vmem:[#allocation7 + $0x5c] sm:$0xf]
    %v87 = vld [vmem:[#allocation7 + $0x60] sm:$0xf]
    %v88 = vld [vmem:[#allocation7 + $0x64] sm:$0xf]
    %v89 = vld [vmem:[#allocation7 + $0x68] sm:$0xf]
    %v90 = vld [vmem:[#allocation7 + $0x6c] sm:$0xf]
    %v91 = vld [vmem:[#allocation7 + $0x70] sm:$0xf]
    %v92 = vld [vmem:[#allocation7 + $0x74] sm:$0xf]
    %v93 = vld [vmem:[#allocation7 + $0x78] sm:$0xf]
    %v94 = vld [vmem:[#allocation7 + $0x7c] sm:$0xf]
    %v95 = vld [vmem:[#allocation5] sm:$0xff]
    %v96 = vld [vmem:[#allocation5 + $0x8] sm:$0xff]
    %v97 = vld [vmem:[#allocation5 + $0x10] sm:$0x77]
    %v101 = vunpack.c.l.b16 %v95
    %v102 = vunpack.c.h.b16 %v95
    %v103 = vunpack.c.l.b16 %v96
    %v104 = vunpack.c.h.b16 %v96
    %v105 = vunpack.c.l.b16 %v97
    %v106 = vunpack.c.h.b16 %v97
    %v107 = vpack.c.b16 %v103, %v101
    %v108 = vpack.c.b16 %v104, %v102
    %v109 = vpack.c.b16 %v105, %v105
    %v110 = vpack.c.b16 %v106, %v106
    %vm113 = vcmask 171008
    %v115 = vsel %vm113, %v62, 0
    %vm117 = vcmask 1041408
    %vm118 = vcmask 1042432
    %v119 = vsel %vm117, 4294967295, 65535
    %v120 = vsel %vm118, %v119, 0
    %v122 = vand.u32 %v109, %v120
    %v125 = vand.u32 %v110, %v120
    %127 = vmatprep.subr.bf16.mxu0 0
    %128 = vmatpush1.bf16.msra.mxu0 0
    %129 = vmatprep.subr.bf16.mxu0 0
    %130 = vmatpush1.bf16.msra.mxu0 0
    %131 = vmatprep.subr.bf16.mxu0 0
    %132 = vmatpush1.bf16.msra.mxu0 0
    %133 = vmatprep.subr.bf16.mxu0 0
    %134 = vmatpush1.bf16.msra.mxu0 0
    %135 = vmatprep.subr.bf16.mxu0 0
    %136 = vmatpush1.bf16.msra.mxu0 0
    %137 = vmatprep.subr.bf16.mxu0 0
    %138 = vmatpush1.bf16.msra.mxu0 0
    %139 = vmatprep.subr.bf16.mxu0 %v125
    %140 = vmatpush1.bf16.msra.mxu0 %v122
    %141 = vmatprep.subr.bf16.mxu0 %v108
    %142 = vmatpush1.bf16.msra.mxu0 %v107
    %143 = vmatprep.subr.bf16.mxu0 0
    %144 = vmatpush2.bf16.msra.mxu0 0
    %145 = vmatprep.subr.bf16.mxu0 0
    %146 = vmatpush2.bf16.msra.mxu0 0
    %147 = vmatprep.subr.bf16.mxu0 0
    %148 = vmatpush2.bf16.msra.mxu0 0
    %149 = vmatprep.subr.bf16.mxu0 0
    %150 = vmatpush2.bf16.msra.mxu0 0
    %151 = vmatprep.subr.bf16.mxu0 0
    %152 = vmatpush2.bf16.msra.mxu0 0
    %153 = vmatprep.subr.bf16.mxu0 0
    %154 = vmatpush2.bf16.msra.mxu0 0
    %155 = vmatprep.subr.bf16.mxu0 0
    %156 = vmatpush2.bf16.msra.mxu0 0
    %157 = vmatprep.subr.bf16.mxu0 0
    %158 = vmatpush2.bf16.msra.mxu0 0
    %159 = vmatprep.mubr.bf16.mxu0 0
    %160 = vmatmul.mubr.bf16.gmra.mxu0 %v115
    %v161 = vpop.f32.mrf.mxu0
    %v162 = vadd.f32 0.0, %v161
    %v163 = vpop.f32.mrf.mxu0
    %v164 = vadd.f32 0.0, %v163
    %v165 = vpop.f32.mrf.mxu0
    %v166 = vpop.f32.mrf.mxu0
    %167 = vdwg.mxu0
    %v168 = vld [vmem:[#allocation8] sm:$0xff]
    %v169 = vpack.c.bf16 %v162, %v162
    %v170 = vpack.c.bf16 %v164, %v164
    %v203 = vunpack.c.l.b16 %v63
    %v204 = vunpack.c.l.b16 %v64
    %v205 = vunpack.c.l.b16 %v65
    %v206 = vunpack.c.l.b16 %v66
    %v207 = vunpack.c.l.b16 %v67
    %v208 = vunpack.c.l.b16 %v68
    %v209 = vunpack.c.l.b16 %v69
    %v210 = vunpack.c.l.b16 %v70
    %v211 = vunpack.c.l.b16 %v71
    %v212 = vunpack.c.l.b16 %v72
    %v213 = vunpack.c.l.b16 %v73
    %v214 = vunpack.c.l.b16 %v74
    %v215 = vunpack.c.l.b16 %v75
    %v216 = vunpack.c.l.b16 %v76
    %v217 = vunpack.c.l.b16 %v77
    %v218 = vunpack.c.l.b16 %v78
    %v219 = vunpack.c.l.b16 %v79
    %v220 = vunpack.c.l.b16 %v80
    %v221 = vunpack.c.l.b16 %v81
    %v222 = vunpack.c.l.b16 %v82
    %v223 = vunpack.c.l.b16 %v83
    %v224 = vunpack.c.l.b16 %v84
    %v225 = vunpack.c.l.b16 %v85
    %v226 = vunpack.c.l.b16 %v86
    %v227 = vunpack.c.l.b16 %v87
    %v228 = vunpack.c.l.b16 %v88
    %v229 = vunpack.c.l.b16 %v89
    %v230 = vunpack.c.l.b16 %v90
    %v231 = vunpack.c.l.b16 %v91
    %v232 = vunpack.c.l.b16 %v92
    %v233 = vunpack.c.l.b16 %v93
    %v234 = vunpack.c.l.b16 %v94
    %v235 = vpack.c.b16 %v204, %v203
    %v236 = vpack.c.b16 %v206, %v205
    %v237 = vpack.c.b16 %v208, %v207
    %v238 = vpack.c.b16 %v210, %v209
    %v239 = vpack.c.b16 %v212, %v211
    %v240 = vpack.c.b16 %v214, %v213
    %v241 = vpack.c.b16 %v216, %v215
    %v242 = vpack.c.b16 %v218, %v217
    %v243 = vpack.c.b16 %v220, %v219
    %v244 = vpack.c.b16 %v222, %v221
    %v245 = vpack.c.b16 %v224, %v223
    %v246 = vpack.c.b16 %v226, %v225
    %v247 = vpack.c.b16 %v228, %v227
    %v248 = vpack.c.b16 %v230, %v229
    %v249 = vpack.c.b16 %v232, %v231
    %v250 = vpack.c.b16 %v234, %v233
    %267 = vmatprep.subr.bf16.mxu0 0
    %268 = vmatpush1.bf16.msra.mxu0 %v242
    %269 = vmatprep.subr.bf16.mxu0 0
    %270 = vmatpush1.bf16.msra.mxu0 %v241
    %271 = vmatprep.subr.bf16.mxu0 0
    %272 = vmatpush1.bf16.msra.mxu0 %v240
    %273 = vmatprep.subr.bf16.mxu0 0
    %274 = vmatpush1.bf16.msra.mxu0 %v239
    %275 = vmatprep.subr.bf16.mxu0 0
    %276 = vmatpush1.bf16.msra.mxu0 %v238
    %277 = vmatprep.subr.bf16.mxu0 0
    %278 = vmatpush1.bf16.msra.mxu0 %v237
    %279 = vmatprep.subr.bf16.mxu0 0
    %280 = vmatpush1.bf16.msra.mxu0 %v236
    %281 = vmatprep.subr.bf16.mxu0 0
    %282 = vmatpush1.bf16.msra.mxu0 %v235
    %283 = vmatprep.subr.bf16.mxu0 0
    %284 = vmatpush2.bf16.msra.mxu0 %v250
    %285 = vmatprep.subr.bf16.mxu0 0
    %286 = vmatpush2.bf16.msra.mxu0 %v249
    %287 = vmatprep.subr.bf16.mxu0 0
    %288 = vmatpush2.bf16.msra.mxu0 %v248
    %289 = vmatprep.subr.bf16.mxu0 0
    %290 = vmatpush2.bf16.msra.mxu0 %v247
    %291 = vmatprep.subr.bf16.mxu0 0
    %292 = vmatpush2.bf16.msra.mxu0 %v246
    %293 = vmatprep.subr.bf16.mxu0 0
    %294 = vmatpush2.bf16.msra.mxu0 %v245
    %295 = vmatprep.subr.bf16.mxu0 0
    %296 = vmatpush2.bf16.msra.mxu0 %v244
    %297 = vmatprep.subr.bf16.mxu0 0
    %298 = vmatpush2.bf16.msra.mxu0 %v243
    %299 = vmatprep.mubr.bf16.mxu0 %v170
    %300 = vmatmul.mubr.bf16.gmra.mxu0 %v169
    %v301 = vpop.f32.mrf.mxu0
    %v302 = vadd.f32 0.0, %v301
    %v303 = vpop.f32.mrf.mxu0
    %v304 = vpop.f32.mrf.mxu0
    %v305 = vpop.f32.mrf.mxu0
    %306 = vdwg.mxu0
    %v307 = vadd.f32 %v168, %v302
    %308 = vst [vmem:[#allocation8] sm:$0xff] %v307
    %s309 = scalar_lea.vmem [#allocation5], 24
    %v310 = vld [vmem:[%s309] sm:$0xff]
    %v311 = vld [vmem:[%s309 + $0x8] sm:$0xff]
    %v312 = vld [vmem:[%s309 + $0x10] sm:$0x77]
    %v316 = vunpack.c.l.b16 %v310
    %v317 = vunpack.c.h.b16 %v310
    %v318 = vunpack.c.l.b16 %v311
    %v319 = vunpack.c.h.b16 %v311
    %v320 = vunpack.c.l.b16 %v312
    %v321 = vunpack.c.h.b16 %v312
    %v322 = vpack.c.b16 %v318, %v316
    %v323 = vpack.c.b16 %v319, %v317
    %v324 = vpack.c.b16 %v320, %v320
    %v325 = vpack.c.b16 %v321, %v321
    %v329 = vand.u32 %v324, %v120
    %v332 = vand.u32 %v325, %v120
    %334 = vmatprep.subr.bf16.mxu0 0
    %335 = vmatpush1.bf16.msra.mxu0 0
    %336 = vmatprep.subr.bf16.mxu0 0
    %337 = vmatpush1.bf16.msra.mxu0 0
    %338 = vmatprep.subr.bf16.mxu0 0
    %339 = vmatpush1.bf16.msra.mxu0 0
    %340 = vmatprep.subr.bf16.mxu0 0
    %341 = vmatpush1.bf16.msra.mxu0 0
    %342 = vmatprep.subr.bf16.mxu0 0
    %343 = vmatpush1.bf16.msra.mxu0 0
    %344 = vmatprep.subr.bf16.mxu0 0
    %345 = vmatpush1.bf16.msra.mxu0 0
    %346 = vmatprep.subr.bf16.mxu0 %v332
    %347 = vmatpush1.bf16.msra.mxu0 %v329
    %348 = vmatprep.subr.bf16.mxu0 %v323
    %349 = vmatpush1.bf16.msra.mxu0 %v322
    %350 = vmatprep.subr.bf16.mxu0 0
    %351 = vmatpush2.bf16.msra.mxu0 0
    %352 = vmatprep.subr.bf16.mxu0 0
    %353 = vmatpush2.bf16.msra.mxu0 0
    %354 = vmatprep.subr.bf16.mxu0 0
    %355 = vmatpush2.bf16.msra.mxu0 0
    %356 = vmatprep.subr.bf16.mxu0 0
    %357 = vmatpush2.bf16.msra.mxu0 0
    %358 = vmatprep.subr.bf16.mxu0 0
    %359 = vmatpush2.bf16.msra.mxu0 0
    %360 = vmatprep.subr.bf16.mxu0 0
    %361 = vmatpush2.bf16.msra.mxu0 0
    %362 = vmatprep.subr.bf16.mxu0 0
    %363 = vmatpush2.bf16.msra.mxu0 0
    %364 = vmatprep.subr.bf16.mxu0 0
    %365 = vmatpush2.bf16.msra.mxu0 0
    %366 = vmatprep.mubr.bf16.mxu0 0
    %367 = vmatmul.mubr.bf16.gmra.mxu0 %v115
    %v368 = vpop.f32.mrf.mxu0
    %v369 = vadd.f32 0.0, %v368
    %v370 = vpop.f32.mrf.mxu0
    %v371 = vadd.f32 0.0, %v370
    %v372 = vpop.f32.mrf.mxu0
    %v373 = vpop.f32.mrf.mxu0
    %374 = vdwg.mxu0
    %s375 = scalar_lea.vmem [#allocation8], 8
    %v376 = vld [vmem:[%s375] sm:$0xff]
    %v377 = vpack.c.bf16 %v369, %v369
    %v378 = vpack.c.bf16 %v371, %v371
    %379 = vmatprep.subr.bf16.mxu0 0
    %380 = vmatpush1.bf16.msra.mxu0 %v242
    %381 = vmatprep.subr.bf16.mxu0 0
    %382 = vmatpush1.bf16.msra.mxu0 %v241
    %383 = vmatprep.subr.bf16.mxu0 0
    %384 = vmatpush1.bf16.msra.mxu0 %v240
    %385 = vmatprep.subr.bf16.mxu0 0
    %386 = vmatpush1.bf16.msra.mxu0 %v239
    %387 = vmatprep.subr.bf16.mxu0 0
    %388 = vmatpush1.bf16.msra.mxu0 %v238
    %389 = vmatprep.subr.bf16.mxu0 0
    %390 = vmatpush1.bf16.msra.mxu0 %v237
    %391 = vmatprep.subr.bf16.mxu0 0
    %392 = vmatpush1.bf16.msra.mxu0 %v236
    %393 = vmatprep.subr.bf16.mxu0 0
    %394 = vmatpush1.bf16.msra.mxu0 %v235
    %395 = vmatprep.subr.bf16.mxu0 0
    %396 = vmatpush2.bf16.msra.mxu0 %v250
    %397 = vmatprep.subr.bf16.mxu0 0
    %398 = vmatpush2.bf16.msra.mxu0 %v249
    %399 = vmatprep.subr.bf16.mxu0 0
    %400 = vmatpush2.bf16.msra.mxu0 %v248
    %401 = vmatprep.subr.bf16.mxu0 0
    %402 = vmatpush2.bf16.msra.mxu0 %v247
    %403 = vmatprep.subr.bf16.mxu0 0
    %404 = vmatpush2.bf16.msra.mxu0 %v246
    %405 = vmatprep.subr.bf16.mxu0 0
    %406 = vmatpush2.bf16.msra.mxu0 %v245
    %407 = vmatprep.subr.bf16.mxu0 0
    %408 = vmatpush2.bf16.msra.mxu0 %v244
    %409 = vmatprep.subr.bf16.mxu0 0
    %410 = vmatpush2.bf16.msra.mxu0 %v243
    %411 = vmatprep.mubr.bf16.mxu0 %v378
    %412 = vmatmul.mubr.bf16.gmra.mxu0 %v377
    %v413 = vpop.f32.mrf.mxu0
    %v414 = vadd.f32 0.0, %v413
    %v415 = vpop.f32.mrf.mxu0
    %v416 = vpop.f32.mrf.mxu0
    %v417 = vpop.f32.mrf.mxu0
    %418 = vdwg.mxu0
    %v419 = vadd.f32 %v376, %v414
    %420 = vst [vmem:[%s375] sm:$0xff] %v419
    %s421 = scalar_lea.vmem [#allocation5], 48
    %v422 = vld [vmem:[%s421] sm:$0xff]
    %v423 = vld [vmem:[%s421 + $0x8] sm:$0xff]
    %v424 = vld [vmem:[%s421 + $0x10] sm:$0x77]
    %v428 = vunpack.c.l.b16 %v422
    %v429 = vunpack.c.h.b16 %v422
    %v430 = vunpack.c.l.b16 %v423
    %v431 = vunpack.c.h.b16 %v423
    %v432 = vunpack.c.l.b16 %v424
    %v433 = vunpack.c.h.b16 %v424
    %v434 = vpack.c.b16 %v430, %v428
    %v435 = vpack.c.b16 %v431, %v429
    %v436 = vpack.c.b16 %v432, %v432
    %v437 = vpack.c.b16 %v433, %v433
    %v441 = vand.u32 %v436, %v120
    %v444 = vand.u32 %v437, %v120
    %446 = vmatprep.subr.bf16.mxu0 0
    %447 = vmatpush1.bf16.msra.mxu0 0
    %448 = vmatprep.subr.bf16.mxu0 0
    %449 = vmatpush1.bf16.msra.mxu0 0
    %450 = vmatprep.subr.bf16.mxu0 0
    %451 = vmatpush1.bf16.msra.mxu0 0
    %452 = vmatprep.subr.bf16.mxu0 0
    %453 = vmatpush1.bf16.msra.mxu0 0
    %454 = vmatprep.subr.bf16.mxu0 0
    %455 = vmatpush1.bf16.msra.mxu0 0
    %456 = vmatprep.subr.bf16.mxu0 0
    %457 = vmatpush1.bf16.msra.mxu0 0
    %458 = vmatprep.subr.bf16.mxu0 %v444
    %459 = vmatpush1.bf16.msra.mxu0 %v441
    %460 = vmatprep.subr.bf16.mxu0 %v435
    %461 = vmatpush1.bf16.msra.mxu0 %v434
    %462 = vmatprep.subr.bf16.mxu0 0
    %463 = vmatpush2.bf16.msra.mxu0 0
    %464 = vmatprep.subr.bf16.mxu0 0
    %465 = vmatpush2.bf16.msra.mxu0 0
    %466 = vmatprep.subr.bf16.mxu0 0
    %467 = vmatpush2.bf16.msra.mxu0 0
    %468 = vmatprep.subr.bf16.mxu0 0
    %469 = vmatpush2.bf16.msra.mxu0 0
    %470 = vmatprep.subr.bf16.mxu0 0
    %471 = vmatpush2.bf16.msra.mxu0 0
    %472 = vmatprep.subr.bf16.mxu0 0
    %473 = vmatpush2.bf16.msra.mxu0 0
    %474 = vmatprep.subr.bf16.mxu0 0
    %475 = vmatpush2.bf16.msra.mxu0 0
    %476 = vmatprep.subr.bf16.mxu0 0
    %477 = vmatpush2.bf16.msra.mxu0 0
    %478 = vmatprep.mubr.bf16.mxu0 0
    %479 = vmatmul.mubr.bf16.gmra.mxu0 %v115
    %v480 = vpop.f32.mrf.mxu0
    %v481 = vadd.f32 0.0, %v480
    %v482 = vpop.f32.mrf.mxu0
    %v483 = vadd.f32 0.0, %v482
    %v484 = vpop.f32.mrf.mxu0
    %v485 = vpop.f32.mrf.mxu0
    %486 = vdwg.mxu0
    %s487 = scalar_lea.vmem [#allocation8], 16
    %v488 = vld [vmem:[%s487] sm:$0xff]
    %v489 = vpack.c.bf16 %v481, %v481
    %v490 = vpack.c.bf16 %v483, %v483
    %491 = vmatprep.subr.bf16.mxu0 0
    %492 = vmatpush1.bf16.msra.mxu0 %v242
    %493 = vmatprep.subr.bf16.mxu0 0
    %494 = vmatpush1.bf16.msra.mxu0 %v241
    %495 = vmatprep.subr.bf16.mxu0 0
    %496 = vmatpush1.bf16.msra.mxu0 %v240
    %497 = vmatprep.subr.bf16.mxu0 0
    %498 = vmatpush1.bf16.msra.mxu0 %v239
    %499 = vmatprep.subr.bf16.mxu0 0
    %500 = vmatpush1.bf16.msra.mxu0 %v238
    %501 = vmatprep.subr.bf16.mxu0 0
    %502 = vmatpush1.bf16.msra.mxu0 %v237
    %503 = vmatprep.subr.bf16.mxu0 0
    %504 = vmatpush1.bf16.msra.mxu0 %v236
    %505 = vmatprep.subr.bf16.mxu0 0
    %506 = vmatpush1.bf16.msra.mxu0 %v235
    %507 = vmatprep.subr.bf16.mxu0 0
    %508 = vmatpush2.bf16.msra.mxu0 %v250
    %509 = vmatprep.subr.bf16.mxu0 0
    %510 = vmatpush2.bf16.msra.mxu0 %v249
    %511 = vmatprep.subr.bf16.mxu0 0
    %512 = vmatpush2.bf16.msra.mxu0 %v248
    %513 = vmatprep.subr.bf16.mxu0 0
    %514 = vmatpush2.bf16.msra.mxu0 %v247
    %515 = vmatprep.subr.bf16.mxu0 0
    %516 = vmatpush2.bf16.msra.mxu0 %v246
    %517 = vmatprep.subr.bf16.mxu0 0
    %518 = vmatpush2.bf16.msra.mxu0 %v245
    %519 = vmatprep.subr.bf16.mxu0 0
    %520 = vmatpush2.bf16.msra.mxu0 %v244
    %521 = vmatprep.subr.bf16.mxu0 0
    %522 = vmatpush2.bf16.msra.mxu0 %v243
    %523 = vmatprep.mubr.bf16.mxu0 %v490
    %524 = vmatmul.mubr.bf16.gmra.mxu0 %v489
    %v525 = vpop.f32.mrf.mxu0
    %v526 = vadd.f32 0.0, %v525
    %v527 = vpop.f32.mrf.mxu0
    %v528 = vpop.f32.mrf.mxu0
    %v529 = vpop.f32.mrf.mxu0
    %530 = vdwg.mxu0
    %v531 = vadd.f32 %v488, %v526
    %532 = vst [vmem:[%s487] sm:$0xff] %v531
    // Predicated region
    $region30: #{tpu_custom_call.1} parent=1 // pred_check
      _
    $region31: #{tpu_custom_call.1} parent=1 // pred_check_branch
      %534 = sbr.rel (0) target = $region33
    $region32: #{tpu_custom_call.1} parent=1 // pred_region
      %s536 = ssub.s32 384, 384
      %537 = vsyncadd [#allocation4], %s536
      %s538 = sshll.u32 [#allocation8], 4
      %s539 = int_to_ptr.vmem [resolvable:$true] %s538
      %544 = dma.vmem_to_hbm [thread:$0]  %s539, 384, %s3, [#allocation4], 128, 128, 8
    $region33: #{tpu_custom_call.1} parent=1 // pred_fallthru
      _
    // Predicated region
    $region34: #{tpu_custom_call.1} parent=1 // pred_check
      _
    $region35: #{tpu_custom_call.1} parent=1 // pred_check_branch
      %546 = sbr.rel (0) target = $region37
    $region36: #{tpu_custom_call.1} parent=1 // pred_region
      %547 = dma.done [#allocation4], 384
    $region37: #{tpu_custom_call.1} parent=1 // pred_fallthru
      _
    %548 = vsyncpa [#allocation3], 1
    %549 = vsyncpa [#allocation6], 1
    %550 = vsyncpa [#allocation4], 1

</llo_original>
